<compile_context>
chip_gen: v6e
topology: v6e:2x2x1
jax: 0.10.0
libtpu: 0.0.40
codegen_flags: <defaults>
</compile_context>

<pallas_src>
import jax
import jax.numpy as jnp
from jax.experimental import pallas as pl
from jax.experimental.pallas import tpu as pltpu


def _round_up(x, m):
    return ((x + m - 1) // m) * m


def _chip_tile_defaults():
    """Generation-aware (tm, tn, tk, vmem_limit_bytes)."""
    try:
        vmem = pltpu.get_tpu_info().vmem_capacity_bytes
    except Exception:
        vmem = 64 << 20                 # conservative: assume small-VMEM chip
    if vmem >= (96 << 20):              # v5e / v6e: 128 MiB physical VMEM
        return 1024, 1024, 1024, 64 << 20
    else:                               # v7x: 64 MiB VMEM per TensorCore
        return 512, 1024, 1024, 48 << 20


def _fc_kernel_f32out(x_ref, w_ref, b_ref, o_ref):
    """relu(x @ w + b); accumulates directly into the resident f32 output."""
    k = pl.program_id(2)
    partial = jnp.dot(x_ref[...], w_ref[...],
                      preferred_element_type=jnp.float32)

    @pl.when(k == 0)
    def _():
        o_ref[...] = partial

    @pl.when(k > 0)
    def _():
        o_ref[...] = o_ref[...] + partial

    @pl.when(k == pl.num_programs(2) - 1)
    def _():
        o_ref[...] = jnp.maximum(o_ref[...] + b_ref[...], 0.0)


def _fc_kernel_acc(x_ref, w_ref, b_ref, o_ref, acc_ref):
    """Same, with an f32 VMEM accumulator for narrow output dtypes."""
    k = pl.program_id(2)
    partial = jnp.dot(x_ref[...], w_ref[...],
                      preferred_element_type=jnp.float32)

    @pl.when(k == 0)
    def _():
        acc_ref[...] = partial

    @pl.when(k > 0)
    def _():
        acc_ref[...] = acc_ref[...] + partial

    @pl.when(k == pl.num_programs(2) - 1)
    def _():
        o_ref[...] = jnp.maximum(acc_ref[...] + b_ref[...],
                                 0.0).astype(o_ref.dtype)


def prepare_fc_params(weight, bias, *, compute_dtype=jnp.bfloat16):
    """One-time (init) prep: transpose (out,in)->(in,out), cast to the MXU
    compute dtype and pad K/N to tile multiples so the hot path never touches
    the weight again. Returns (w_t, bias_f32, out_features)."""
    out_size, in_size = weight.shape
    _, tn, tk, _ = _chip_tile_defaults()
    tn = min(tn, _round_up(out_size, 128))
    tk = min(tk, _round_up(in_size, 128))
    Kp, Np = _round_up(in_size, tk), _round_up(out_size, tn)

    w_t = jnp.asarray(weight, dtype=compute_dtype).T
    if (Kp, Np) != (in_size, out_size):
        w_t = jnp.pad(w_t, ((0, Kp - in_size), (0, Np - out_size)))
    b = jnp.asarray(bias, dtype=jnp.float32)
    if Np != out_size:
        b = jnp.pad(b, (0, Np - out_size))
    return w_t, b, out_size


def fc_forward(x, w_t, bias, *, out_features=None, tm=None, tn=None, tk=None,
               compute_dtype=jnp.bfloat16, out_dtype=jnp.float32,
               use_pallas=None):
    """relu(x @ w_t + bias)  ==  FC (nn.Linear + ReLU).

    x:    (M, K)   activations (keep them bf16 upstream to avoid a cast pass)
    w_t:  (K', N') weight, pre-transposed (ideally from prepare_fc_params:
                   already compute_dtype and padded to tile multiples)
    bias: (N',)    bias (f32, padded to match w_t when prepared)
    out_features:  logical output width (returned by prepare_fc_params)
    """
    M, Kx = x.shape
    Kw, Nw = w_t.shape
    assert Kx <= Kw, "x feature dim exceeds weight in-dim"
    assert bias.shape == (Nw,)
    n_out = out_features if out_features is not None else Nw

    tm_d, tn_d, tk_d, vmem_limit = _chip_tile_defaults()
    tm = tm if tm is not None else tm_d
    tn = tn if tn is not None else tn_d
    tk = tk if tk is not None else tk_d

    # Small-problem escape hatch: fixed pallas_call / grid-step overhead and a
    # mostly-empty MXU pass make plain XLA faster for tiny layers.
    if use_pallas is None:
        use_pallas = (M * Kw * n_out) >= (1 << 22)
    if not use_pallas:
        xf = x if x.dtype == compute_dtype else x.astype(compute_dtype)
        if Kx < Kw:
            xf = jnp.pad(xf, ((0, 0), (0, Kw - Kx)))
        y = jnp.dot(xf, w_t.astype(compute_dtype),
                    preferred_element_type=jnp.float32)
        y = jnp.maximum(y + bias.astype(jnp.float32), 0.0).astype(out_dtype)
        return y[:, :n_out]

    # Clamp tiles to the (padded) problem: 128-lane N/K, 16-sublane M.
    tm = min(tm, _round_up(M, 16))
    tn = min(tn, _round_up(Nw, 128))
    tk = min(tk, _round_up(Kw, 128))
    Mp, Np, Kp = _round_up(M, tm), _round_up(Nw, tn), _round_up(Kw, tk)

    # Megacore guard (v7x): ensure >=2 parallel output tiles so both
    # TensorCores get work. Halving a tile keeps divisibility of Mp/Np.
    while (Mp // tm) * (Np // tn) < 2:
        if tn >= 256 and (tn // 2) % 128 == 0:
            tn //= 2
        elif tm >= 32 and (tm // 2) % 16 == 0:
            tm //= 2
        else:
            break

    # Casts/pads below are no-ops when params came from prepare_fc_params and
    # activations are already in compute_dtype.
    xc = x if x.dtype == compute_dtype else x.astype(compute_dtype)
    wc = w_t if w_t.dtype == compute_dtype else w_t.astype(compute_dtype)
    bc = bias if bias.dtype == jnp.float32 else bias.astype(jnp.float32)
    if (Mp, Kp) != (M, Kx):
        xc = jnp.pad(xc, ((0, Mp - M), (0, Kp - Kx)))
    if (Kp, Np) != (Kw, Nw):
        wc = jnp.pad(wc, ((0, Kp - Kw), (0, Np - Nw)))
    if Np != Nw:
        bc = jnp.pad(bc, (0, Np - Nw))
    b2 = bc.reshape(1, Np)

    grid = (Mp // tm, Np // tn, Kp // tk)
    out_itemsize = jnp.dtype(out_dtype).itemsize
    cost = pl.CostEstimate(
        flops=2 * Mp * Np * Kp,
        transcendentals=0,
        bytes_accessed=(xc.size * xc.dtype.itemsize * grid[1]    # x re-read / N tile
                        + wc.size * wc.dtype.itemsize * grid[0]  # w re-read / M tile
                        + b2.size * 4 * grid[0]
                        + Mp * Np * out_itemsize),
    )

    f32_out = jnp.dtype(out_dtype) == jnp.dtype(jnp.float32)
    kernel = _fc_kernel_f32out if f32_out else _fc_kernel_acc
    scratch = [] if f32_out else [pltpu.VMEM((tm, tn), jnp.float32)]

    out = pl.pallas_call(
        kernel,
        out_shape=jax.ShapeDtypeStruct((Mp, Np), out_dtype),
        grid_spec=pltpu.PrefetchScalarGridSpec(
            num_scalar_prefetch=0,
            grid=grid,
            in_specs=[
                pl.BlockSpec((tm, tk), lambda i, j, k: (i, k)),
                pl.BlockSpec((tk, tn), lambda i, j, k: (k, j)),
                pl.BlockSpec((1, tn), lambda i, j, k: (0, j)),
            ],
            out_specs=pl.BlockSpec((tm, tn), lambda i, j, k: (i, j)),
            scratch_shapes=scratch,
        ),
        compiler_params=pltpu.CompilerParams(
            dimension_semantics=("parallel", "parallel", "arbitrary"),
            vmem_limit_bytes=vmem_limit),
        cost_estimate=cost,
    )(xc, wc, b2)

    if (M, n_out) != (Mp, Np):
        out = out[:M, :n_out]
    return out


if __name__ == "__main__":
    key = jax.random.PRNGKey(0)
    k1, k2, k3, k4 = jax.random.split(key, 4)

    # ---- Case 1: tiny FC(32 -> 16), shapes consistent with the module.
    B, in_size, out_size = 8, 32, 16
    x = jax.random.normal(k1, (B, in_size), dtype=jnp.float32)
    bound = 1.0 / (in_size ** 0.5)
    weight = jax.random.uniform(k2, (out_size, in_size), jnp.float32,
                                minval=-bound, maxval=bound)
    bias = jax.random.uniform(k3, (out_size,), jnp.float32,
                              minval=-bound, maxval=bound)

    w_t, b_p, n_out = prepare_fc_params(weight, bias)
    # Force the Pallas path so the kernel itself is exercised (the auto
    # heuristic would route this tiny layer to plain XLA).
    out = fc_forward(x, w_t, b_p, out_features=n_out, use_pallas=True)
    jax.block_until_ready(out)
    assert out.shape == (B, out_size)

    # Reference with the same bf16-quantized inputs + f32 accumulation.
    ref_bf16 = jnp.maximum(
        x.astype(jnp.bfloat16).astype(jnp.float32)
        @ weight.T.astype(jnp.bfloat16).astype(jnp.float32) + bias, 0.0)
    assert jnp.allclose(out, ref_bf16, atol=1e-4, rtol=1e-4)
    # Loose sanity check vs. full-precision PyTorch-equivalent result.
    ref_f32 = jnp.maximum(x @ weight.T + bias, 0.0)
    assert jnp.allclose(out, ref_f32, atol=5e-2, rtol=5e-2)

    # ---- Case 2: moderate FC(512 -> 384) through the auto path (tiled grid
    # plus the megacore tile split), params prepared once at "init".
    M2, K2, N2 = 256, 512, 384
    x2 = jax.random.normal(k4, (M2, K2), dtype=jnp.float32)
    w2 = jax.random.uniform(k2, (N2, K2), jnp.float32, minval=-0.05, maxval=0.05)
    b2 = jax.random.uniform(k3, (N2,), jnp.float32, minval=-0.05, maxval=0.05)
    w2_t, b2_p, n2_out = prepare_fc_params(w2, b2)
    out2 = fc_forward(x2, w2_t, b2_p, out_features=n2_out)
    jax.block_until_ready(out2)
    assert out2.shape == (M2, N2)
    ref2 = jnp.maximum(
        x2.astype(jnp.bfloat16).astype(jnp.float32)
        @ w2.T.astype(jnp.bfloat16).astype(jnp.float32) + b2, 0.0)
    assert jnp.allclose(out2, ref2, atol=1e-3, rtol=1e-3)

    print("KERNEL_OK")
</pallas_src>

<mosaic_0001>
module attributes {stable_mosaic.version = 11 : i64} {
  func.func @_fc_kernel_f32out(%arg0: i32, %arg1: i32, %arg2: i32, %arg3: memref<16x128xbf16, #tpu.memory_space<vmem>>, %arg4: memref<128x128xbf16, #tpu.memory_space<vmem>>, %arg5: memref<1x128xf32, #tpu.memory_space<vmem>>, %arg6: memref<16x128xf32, #tpu.memory_space<vmem>>) attributes {dimension_semantics = [#tpu.dimension_semantics<parallel>, #tpu.dimension_semantics<parallel>, #tpu.dimension_semantics<arbitrary>], iteration_bounds = array<i64: 1, 1, 1>, scalar_prefetch = 0 : i64, scratch_operands = 0 : i64, tpu.core_type = #tpu.core_type<tc>, window_params = [{transform_indices = @transform_0, window_bounds = array<i64: 16, 128>}, {transform_indices = @transform_1, window_bounds = array<i64: 128, 128>}, {transform_indices = @transform_2, window_bounds = array<i64: 1, 128>}, {transform_indices = @transform_3, window_bounds = array<i64: 16, 128>}]} {
    %c0 = arith.constant 0 : index
    %c0_0 = arith.constant 0 : index
    %0 = vector.load %arg3[%c0, %c0_0] : memref<16x128xbf16, #tpu.memory_space<vmem>>, vector<16x128xbf16>
    %c0_1 = arith.constant 0 : index
    %c0_2 = arith.constant 0 : index
    %1 = vector.load %arg4[%c0_1, %c0_2] : memref<128x128xbf16, #tpu.memory_space<vmem>>, vector<128x128xbf16>
    %cst = arith.constant dense<0.000000e+00> : vector<16x128xf32>
    %2 = tpu.matmul %0, %1, %cst {dimension_numbers = #tpu.dot_dimension_numbers<[1], [0], [0], [1], [0, 0, 1, 1], [], []>} : vector<16x128xbf16>, vector<128x128xbf16>, vector<16x128xf32> -> vector<16x128xf32>
    %c0_i32 = arith.constant 0 : i32
    %3 = arith.cmpi eq, %arg2, %c0_i32 : i32
    %4 = arith.extui %3 : i1 to i32
    %c0_i32_3 = arith.constant 0 : i32
    %5 = arith.cmpi ne, %4, %c0_i32_3 : i32
    scf.if %5 {
      %c0_8 = arith.constant 0 : index
      %c0_9 = arith.constant 0 : index
      %12 = vector.load %arg6[%c0_8, %c0_9] : memref<16x128xf32, #tpu.memory_space<vmem>>, vector<16x128xf32>
      tpu.vector_store %arg6[%c0_8, %c0_9], %2 {strides = array<i32>} : memref<16x128xf32, #tpu.memory_space<vmem>>, vector<16x128xf32>,
    } else {
    }
    %c0_i32_4 = arith.constant 0 : i32
    %6 = arith.cmpi sgt, %arg2, %c0_i32_4 : i32
    %7 = arith.extui %6 : i1 to i32
    %c0_i32_5 = arith.constant 0 : i32
    %8 = arith.cmpi ne, %7, %c0_i32_5 : i32
    scf.if %8 {
      %c0_8 = arith.constant 0 : index
      %c0_9 = arith.constant 0 : index
      %12 = vector.load %arg6[%c0_8, %c0_9] : memref<16x128xf32, #tpu.memory_space<vmem>>, vector<16x128xf32>
      %13 = arith.addf %12, %2 : vector<16x128xf32>
      %c0_10 = arith.constant 0 : index
      %c0_11 = arith.constant 0 : index
      %14 = vector.load %arg6[%c0_10, %c0_11] : memref<16x128xf32, #tpu.memory_space<vmem>>, vector<16x128xf32>
      tpu.vector_store %arg6[%c0_10, %c0_11], %13 {strides = array<i32>} : memref<16x128xf32, #tpu.memory_space<vmem>>, vector<16x128xf32>,
    } else {
    }
    %c0_i32_6 = arith.constant 0 : i32
    %9 = arith.cmpi eq, %arg2, %c0_i32_6 : i32
    %10 = arith.extui %9 : i1 to i32
    %c0_i32_7 = arith.constant 0 : i32
    %11 = arith.cmpi ne, %10, %c0_i32_7 : i32
    scf.if %11 {
      %c0_8 = arith.constant 0 : index
      %c0_9 = arith.constant 0 : index
      %12 = vector.load %arg6[%c0_8, %c0_9] : memref<16x128xf32, #tpu.memory_space<vmem>>, vector<16x128xf32>
      %c0_10 = arith.constant 0 : index
      %c0_11 = arith.constant 0 : index
      %13 = vector.load %arg5[%c0_10, %c0_11] : memref<1x128xf32, #tpu.memory_space<vmem>>, vector<1x128xf32>
      %14 = vector.broadcast %13 : vector<1x128xf32> to vector<16x128xf32>
      %15 = arith.addf %12, %14 : vector<16x128xf32>
      %cst_12 = arith.constant 0.000000e+00 : f32
      %16 = vector.broadcast %cst_12 : f32 to vector<16x128xf32>
      %17 = arith.maximumf %15, %16 : vector<16x128xf32>
      %c0_13 = arith.constant 0 : index
      %c0_14 = arith.constant 0 : index
      %18 = vector.load %arg6[%c0_13, %c0_14] : memref<16x128xf32, #tpu.memory_space<vmem>>, vector<16x128xf32>
      tpu.vector_store %arg6[%c0_13, %c0_14], %17 {strides = array<i32>} : memref<16x128xf32, #tpu.memory_space<vmem>>, vector<16x128xf32>,
    } else {
    }
    return
  }
  func.func @transform_0(%arg0: i32, %arg1: i32, %arg2: i32) -> (i32, i32) {
    %c0_i32 = arith.constant 0 : i32
    return %arg0, %arg2 : i32, i32
  }
  func.func @transform_1(%arg0: i32, %arg1: i32, %arg2: i32) -> (i32, i32) {
    %c0_i32 = arith.constant 0 : i32
    return %arg2, %arg1 : i32, i32
  }
  func.func @transform_2(%arg0: i32, %arg1: i32, %arg2: i32) -> (i32, i32) {
    %c0_i32 = arith.constant 0 : i32
    %c0_i32_0 = arith.constant 0 : i32
    return %c0_i32, %arg1 : i32, i32
  }
  func.func @transform_3(%arg0: i32, %arg1: i32, %arg2: i32) -> (i32, i32) {
    %c0_i32 = arith.constant 0 : i32
    return %arg0, %arg1 : i32, i32
  }
}

</mosaic_0001>

<llo_original>
// kernel: tpu_custom_call.1
$region0: #{tpu_custom_call.1}
  #allocation0 [shape = 'u32[]', space=smem, size = 0x4, offset = 0x4, fixed_abs, tag = 'smem constant byte address 0x4 - core index']
  #allocation1 [shape = 'u32[144,128]{1,0:T(1,128)}', space=vmem, size = 0x12000, scoped, tag = 'internal scratch']
  %s0 = inlined_call_operand.hbm [shape: bf16[16,128], index: 0, kind: input, shape index: {}]
  %s1 = inlined_call_operand.hbm [shape: bf16[128,128], index: 1, kind: input, shape index: {}]
  %s2 = inlined_call_operand.vmem [shape: f32[1,128], index: 2, kind: input, shape index: {}]
  %s3 = inlined_call_operand.hbm [shape: f32[16,128], index: 3, kind: output, shape index: {}]
  %s4 = sld [smem:[#allocation0]]
  $region42: #{tpu_custom_call.1} parent=0
    _
  %s6 = ssub.s32 1, %s4
  %s7 = scalar_select 0, %s6, %s4
  $region1: #{tpu_custom_call.1} parent=0
    #allocation2 [shape = 'u8[4096]{0}', space=vmem, size = 0x1000, scoped, tag = 'input window, operand 0, single buffered']
    #allocation3 [shape = 's32[1]{0}', space=sflag, size = 0x4, scoped, tag = 'scoped memory for tpu_custom_call.1']
    #allocation4 [shape = 's32[1]{0}', space=sflag, size = 0x4, scoped, tag = 'scoped memory for tpu_custom_call.1']
    #allocation5 [shape = 'u8[32768]{0}', space=vmem, size = 0x8000, scoped, tag = 'input window, operand 1, single buffered']
    #allocation6 [shape = 's32[1]{0}', space=sflag, size = 0x4, scoped, tag = 'scoped memory for tpu_custom_call.1']
    #allocation7 [shape = 'u8[8192]{0}', space=vmem, size = 0x2000, scoped, tag = 'output window, operand 0, single buffered']
    %8 = vsyncpa [#allocation3], 0
    %9 = vsyncpa [#allocation6], 0
    %10 = vsyncpa [#allocation4], 0
    // Predicated region
    $region2: #{tpu_custom_call.1} parent=1 // pred_check
      _
    $region3: #{tpu_custom_call.1} parent=1 // pred_check_branch
      %12 = sbr.rel (0) target = $region5
    $region4: #{tpu_custom_call.1} parent=1 // pred_region
      %s14 = ssub.s32 128, 128
      %15 = vsyncadd [#allocation3], %s14
      %s16 = sshll.u32 [#allocation2], 4
      %s17 = int_to_ptr.vmem [resolvable:$true] %s16
      %22 = dma.hbm_to_vmem [thread:$0]  %s0, 128, %s17, [#allocation3], 64, 64, 4
    $region5: #{tpu_custom_call.1} parent=1 // pred_fallthru
      _
    // Predicated region
    $region6: #{tpu_custom_call.1} parent=1 // pred_check
      _
    $region7: #{tpu_custom_call.1} parent=1 // pred_check_branch
      %24 = sbr.rel (0) target = $region9
    $region8: #{tpu_custom_call.1} parent=1 // pred_region
      %s26 = ssub.s32 1024, 1024
      %27 = vsyncadd [#allocation6], %s26
      %s28 = sshll.u32 [#allocation5], 4
      %s29 = int_to_ptr.vmem [resolvable:$true] %s28
      %34 = dma.hbm_to_vmem [thread:$0]  %s1, 1024, %s29, [#allocation6], 64, 64, 4
    $region9: #{tpu_custom_call.1} parent=1 // pred_fallthru
      _
    // Predicated region
    $region10: #{tpu_custom_call.1} parent=1 // pred_check
      _
    $region11: #{tpu_custom_call.1} parent=1 // pred_check_branch
      %36 = sbr.rel (0) target = $region13
    $region12: #{tpu_custom_call.1} parent=1 // pred_region
      _
    $region13: #{tpu_custom_call.1} parent=1 // pred_fallthru
      _
    // Predicated region
    $region14: #{tpu_custom_call.1} parent=1 // pred_check
      _
    $region15: #{tpu_custom_call.1} parent=1 // pred_check_branch
      %38 = sbr.rel (0) target = $region17
    $region16: #{tpu_custom_call.1} parent=1 // pred_region
      %39 = dma.done [#allocation3], 128
    $region17: #{tpu_custom_call.1} parent=1 // pred_fallthru
      _
    // Predicated region
    $region18: #{tpu_custom_call.1} parent=1 // pred_check
      _
    $region19: #{tpu_custom_call.1} parent=1 // pred_check_branch
      %41 = sbr.rel (0) target = $region21
    $region20: #{tpu_custom_call.1} parent=1 // pred_region
      %42 = dma.done [#allocation6], 1024
    $region21: #{tpu_custom_call.1} parent=1 // pred_fallthru
      _
    %v44 = vld [vmem:[#allocation2] sm:$0xf]
    %v45 = vld [vmem:[#allocation2 + $0x4] sm:$0xf]
    %v46 = vld [vmem:[#allocation5] sm:$0xf]
    %v47 = vld [vmem:[#allocation5 + $0x4] sm:$0xf]
    %v48 = vld [vmem:[#allocation5 + $0x8] sm:$0xf]
    %v49 = vld [vmem:[#allocation5 + $0xc] sm:$0xf]
    %v50 = vld [vmem:[#allocation5 + $0x10] sm:$0xf]
    %v51 = vld [vmem:[#allocation5 + $0x14] sm:$0xf]
    %v52 = vld [vmem:[#allocation5 + $0x18] sm:$0xf]
    %v53 = vld [vmem:[#allocation5 + $0x1c] sm:$0xf]
    %v54 = vld [vmem:[#allocation5 + $0x20] sm:$0xf]
    %v55 = vld [vmem:[#allocation5 + $0x24] sm:$0xf]
    %v56 = vld [vmem:[#allocation5 + $0x28] sm:$0xf]
    %v57 = vld [vmem:[#allocation5 + $0x2c] sm:$0xf]
    %v58 = vld [vmem:[#allocation5 + $0x30] sm:$0xf]
    %v59 = vld [vmem:[#allocation5 + $0x34] sm:$0xf]
    %v60 = vld [vmem:[#allocation5 + $0x38] sm:$0xf]
    %v61 = vld [vmem:[#allocation5 + $0x3c] sm:$0xf]
    %v64 = vunpack.c.l.b16 %v44
    %v65 = vunpack.c.l.b16 %v45
    %v66 = vpack.c.b16 %v65, %v64
    %v84 = vunpack.c.l.b16 %v46
    %v85 = vunpack.c.l.b16 %v47
    %v86 = vunpack.c.l.b16 %v48
    %v87 = vunpack.c.l.b16 %v49
    %v88 = vunpack.c.l.b16 %v50
    %v89 = vunpack.c.l.b16 %v51
    %v90 = vunpack.c.l.b16 %v52
    %v91 = vunpack.c.l.b16 %v53
    %v92 = vunpack.c.l.b16 %v54
    %v93 = vunpack.c.l.b16 %v55
    %v94 = vunpack.c.l.b16 %v56
    %v95 = vunpack.c.l.b16 %v57
    %v96 = vunpack.c.l.b16 %v58
    %v97 = vunpack.c.l.b16 %v59
    %v98 = vunpack.c.l.b16 %v60
    %v99 = vunpack.c.l.b16 %v61
    %v100 = vpack.c.b16 %v85, %v84
    %v101 = vpack.c.b16 %v87, %v86
    %v102 = vpack.c.b16 %v89, %v88
    %v103 = vpack.c.b16 %v91, %v90
    %v104 = vpack.c.b16 %v93, %v92
    %v105 = vpack.c.b16 %v95, %v94
    %v106 = vpack.c.b16 %v97, %v96
    %v107 = vpack.c.b16 %v99, %v98
    %116 = vmatprep.subr.bf16.mxu0 0
    %117 = vmatpush1.bf16.msra.mxu0 %v107
    %118 = vmatprep.subr.bf16.mxu0 0
    %119 = vmatpush1.bf16.msra.mxu0 %v106
    %120 = vmatprep.subr.bf16.mxu0 0
    %121 = vmatpush1.bf16.msra.mxu0 %v105
    %122 = vmatprep.subr.bf16.mxu0 0
    %123 = vmatpush1.bf16.msra.mxu0 %v104
    %124 = vmatprep.subr.bf16.mxu0 0
    %125 = vmatpush1.bf16.msra.mxu0 %v103
    %126 = vmatprep.subr.bf16.mxu0 0
    %127 = vmatpush1.bf16.msra.mxu0 %v102
    %128 = vmatprep.subr.bf16.mxu0 0
    %129 = vmatpush1.bf16.msra.mxu0 %v101
    %130 = vmatprep.subr.bf16.mxu0 0
    %131 = vmatpush1.bf16.msra.mxu0 %v100
    %132 = vmatprep.subr.bf16.mxu0 0
    %133 = vmatpush2.bf16.msra.mxu0 0
    %134 = vmatprep.subr.bf16.mxu0 0
    %135 = vmatpush2.bf16.msra.mxu0 0
    %136 = vmatprep.subr.bf16.mxu0 0
    %137 = vmatpush2.bf16.msra.mxu0 0
    %138 = vmatprep.subr.bf16.mxu0 0
    %139 = vmatpush2.bf16.msra.mxu0 0
    %140 = vmatprep.subr.bf16.mxu0 0
    %141 = vmatpush2.bf16.msra.mxu0 0
    %142 = vmatprep.subr.bf16.mxu0 0
    %143 = vmatpush2.bf16.msra.mxu0 0
    %144 = vmatprep.subr.bf16.mxu0 0
    %145 = vmatpush2.bf16.msra.mxu0 0
    %146 = vmatprep.subr.bf16.mxu0 0
    %147 = vmatpush2.bf16.msra.mxu0 0
    %148 = vmatprep.mubr.bf16.mxu0 0
    %149 = vmatmul.mubr.bf16.gmra.mxu0 %v66
    %v150 = vpop.f32.mrf.mxu0
    %v151 = vadd.f32 0.0, %v150
    %v152 = vpop.f32.mrf.mxu0
    %v153 = vpop.f32.mrf.mxu0
    %v154 = vadd.f32 0.0, %v153
    %v155 = vpop.f32.mrf.mxu0
    %156 = vdwg.mxu0
    %p157 = scmp.eq.s32.totalorder 0, 0
    // Predicated region
    $region22: #{tpu_custom_call.1} parent=1 // pred_check
      %p158 = pneg %p157
    $region23: #{tpu_custom_call.1} parent=1 // pred_check_branch
      %160 = sbr.rel (%p158) target = $region25
    $region24: #{tpu_custom_call.1} parent=1 // pred_region
      %161 = vst [vmem:[#allocation7] sm:$0xff] %v151
      %162 = vst [vmem:[#allocation7 + $0x8] sm:$0xff] %v154
    $region25: #{tpu_custom_call.1} parent=1 // pred_fallthru
      _
    %p163 = scmp.gt.s32.totalorder 0, 0
    // Predicated region
    $region26: #{tpu_custom_call.1} parent=1 // pred_check
      %p164 = pneg %p163
    $region27: #{tpu_custom_call.1} parent=1 // pred_check_branch
      %166 = sbr.rel (%p164) target = $region29
    $region28: #{tpu_custom_call.1} parent=1 // pred_region
      %v167 = vld [vmem:[#allocation7] sm:$0xff]
      %v168 = vld [vmem:[#allocation7 + $0x8] sm:$0xff]
      %v169 = vadd.f32 %v167, %v151
      %v170 = vadd.f32 %v168, %v154
      %171 = vst [vmem:[#allocation7] sm:$0xff] %v169
      %172 = vst [vmem:[#allocation7 + $0x8] sm:$0xff] %v170
    $region29: #{tpu_custom_call.1} parent=1 // pred_fallthru
      _
    // Predicated region
    $region30: #{tpu_custom_call.1} parent=1 // pred_check
      %p173 = pneg %p157
    $region31: #{tpu_custom_call.1} parent=1 // pred_check_branch
      %175 = sbr.rel (%p173) target = $region33
    $region32: #{tpu_custom_call.1} parent=1 // pred_region
      %v176 = vld [vmem:[#allocation7] sm:$0xff]
      %v177 = vld [vmem:[#allocation7 + $0x8] sm:$0xff]
      %v178 = vld [vmem:[%s2] sm:$0x1]
      %v180 = vlaneseq
      %v181 = vshrl.u32 %v180, 7
      %v182 = vsub.s32 0, %v181
      %v183 = vrot.slane %v178, %v182
      %v185 = vadd.f32 %v176, %v183
      %v186 = vadd.f32 %v177, %v183
      %v187 = vmax.f32 %v185, 0.0
      %v188 = vmax.f32 %v186, 0.0
      %189 = vst [vmem:[#allocation7] sm:$0xff] %v187
      %190 = vst [vmem:[#allocation7 + $0x8] sm:$0xff] %v188
    $region33: #{tpu_custom_call.1} parent=1 // pred_fallthru
      _
    // Predicated region
    $region34: #{tpu_custom_call.1} parent=1 // pred_check
      _
    $region35: #{tpu_custom_call.1} parent=1 // pred_check_branch
      %192 = sbr.rel (0) target = $region37
    $region36: #{tpu_custom_call.1} parent=1 // pred_region
      %s194 = ssub.s32 256, 256
      %195 = vsyncadd [#allocation4], %s194
      %s196 = sshll.u32 [#allocation7], 4
      %s197 = int_to_ptr.vmem [resolvable:$true] %s196
      %202 = dma.vmem_to_hbm [thread:$0]  %s197, 256, %s3, [#allocation4], 128, 128, 8
    $region37: #{tpu_custom_call.1} parent=1 // pred_fallthru
      _
    // Predicated region
    $region38: #{tpu_custom_call.1} parent=1 // pred_check
      _
    $region39: #{tpu_custom_call.1} parent=1 // pred_check_branch
      %204 = sbr.rel (0) target = $region41
    $region40: #{tpu_custom_call.1} parent=1 // pred_region
      %205 = dma.done [#allocation4], 256
    $region41: #{tpu_custom_call.1} parent=1 // pred_fallthru
      _
    %206 = vsyncpa [#allocation3], 1
    %207 = vsyncpa [#allocation6], 1
    %208 = vsyncpa [#allocation4], 1

</llo_original>
